<compile_context>
chip_gen: v6e
topology: v6e:2x2x1
jax: 0.10.0
libtpu: 0.0.40
codegen_flags: <defaults>
</compile_context>

<pallas_src>
import jax
import jax.numpy as jnp
from jax.experimental import pallas as pl
from jax.experimental.pallas import tpu as pltpu


def _round_up(v, m):
    return ((v + m - 1) // m) * m


def _pad_cols(a, n):
    return jnp.pad(a, ((0, 0), (0, n - a.shape[1])))


def _pad_rows(a, n):
    return jnp.pad(a, ((0, n - a.shape[0]), (0, 0)))


def _leaky_relu(x, slope=0.2):
    return jnp.where(x > 0, x, slope * x)


# ---------------------------------------------------------------------------
# Kernel: one batch tile of Triple_Layer_with_Embedding.
# ---------------------------------------------------------------------------
def _triple_layer_kernel(x_ref, t_ref, w1_ref, w2_ref, w3_ref, tw1_ref, tw2_ref,
                         b1_ref, bias_ref, out_ref):
    Hp = w2_ref.shape[0]          # padded hidden width (multiple of 128)
    Op = w3_ref.shape[1]          # padded output width (multiple of 128)
    cdt = w1_ref.dtype            # MXU-operand dtype (bf16 or f32)

    t = t_ref[...].astype(jnp.float32)            # (TB, 1)
    tb1 = bias_ref[0:1, 0:Hp]                     # (1, Hp) f32, lane-aligned slices
    b2 = bias_ref[1:2, 0:Hp]
    b3 = bias_ref[2:3, 0:Op]

    # t-embedding: Linear(1->H) is rank-1 -> VPU broadcast (no K=1 MXU pass),
    # then Linear(H->H) on the MXU. tb2 is pre-folded into b1_ref.
    h_t = _leaky_relu(t * tw1_ref[...] + tb1)     # (TB, Hp) f32, VPU
    t_embed = jnp.dot(h_t.astype(cdt), tw2_ref[...],
                      preferred_element_type=jnp.float32)

    h1 = jnp.dot(x_ref[...].astype(cdt), w1_ref[...],
                 preferred_element_type=jnp.float32) + b1_ref[...] + t_embed
    h1 = _leaky_relu(h1)

    h2 = jnp.dot(h1.astype(cdt), w2_ref[...],
                 preferred_element_type=jnp.float32) + b2
    h2 = _leaky_relu(h2)

    h3 = jnp.dot(h2.astype(cdt), w3_ref[...],
                 preferred_element_type=jnp.float32) + b3
    out_ref[...] = h3.astype(out_ref.dtype)


# ---------------------------------------------------------------------------
# Parameter init (PyTorch-style) and packing for the kernel.
# ---------------------------------------------------------------------------
def init_triple_layer_params(key, input_dim, hidden_dim, output_dim):
    """nn.Linear-style init; weights stored (in_features, out_features)."""
    ks = jax.random.split(key, 10)

    def lin(kw, kb, fan_in, fan_out):
        bound = 1.0 / jnp.sqrt(jnp.float32(fan_in))
        w = jax.random.uniform(kw, (fan_in, fan_out), jnp.float32, -bound, bound)
        b = jax.random.uniform(kb, (1, fan_out), jnp.float32, -bound, bound)
        return w, b

    w1, b1 = lin(ks[0], ks[1], input_dim, hidden_dim)
    w2, b2 = lin(ks[2], ks[3], hidden_dim, hidden_dim)
    w3, b3 = lin(ks[4], ks[5], hidden_dim, output_dim)
    tw1, tb1 = lin(ks[6], ks[7], 1, hidden_dim)
    tw2, tb2 = lin(ks[8], ks[9], hidden_dim, hidden_dim)
    return dict(w1=w1, b1=b1, w2=w2, b2=b2, w3=w3, b3=b3,
                tw1=tw1, tb1=tb1, tw2=tw2, tb2=tb2)


def prepare_triple_layer_params(p, compute_dtype=jnp.bfloat16):
    """Pad feature dims to 128 lanes, fold tb2 into b1, pack small biases into
    one array, and cast MXU operands to compute_dtype (done once, outside the
    kernel)."""
    H = p["w2"].shape[0]
    O = p["w3"].shape[1]
    Hp = _round_up(H, 128)
    Op = _round_up(O, 128)
    P = max(Hp, Op)

    w1 = _pad_cols(p["w1"], Hp).astype(compute_dtype)                   # (D, Hp)
    w2 = _pad_cols(_pad_rows(p["w2"], Hp), Hp).astype(compute_dtype)    # (Hp, Hp)
    w3 = _pad_cols(_pad_rows(p["w3"], Hp), Op).astype(compute_dtype)    # (Hp, Op)
    tw2 = _pad_cols(_pad_rows(p["tw2"], Hp), Hp).astype(compute_dtype)  # (Hp, Hp)
    tw1 = _pad_cols(p["tw1"], Hp).astype(jnp.float32)                   # VPU operand: f32
    b1 = _pad_cols(p["b1"] + p["tb2"], Hp).astype(jnp.float32)          # tb2 folded in
    bias = jnp.concatenate(
        [_pad_cols(p["tb1"], P), _pad_cols(p["b2"], P), _pad_cols(p["b3"], P)],
        axis=0).astype(jnp.float32)                                     # (3, P)
    return dict(w1=w1, w2=w2, w3=w3, tw1=tw1, tw2=tw2, b1=b1, bias=bias,
                O=O, Op=Op)


# ---------------------------------------------------------------------------
# Pallas wrapper: Triple_Layer_with_Embedding forward.
# ---------------------------------------------------------------------------
def triple_layer_forward(x, t, pp, block_b=512):
    """x: (B, D) f32, t: (B, 1) f32, pp: output of prepare_triple_layer_params."""
    B, D = x.shape
    O, Op = pp["O"], pp["Op"]

    TB = min(block_b, _round_up(B, 8))        # rows per grid step
    Bp = _round_up(B, TB)
    if Bp != B:
        x = jnp.pad(x, ((0, Bp - B), (0, 0)))
        t = jnp.pad(t, ((0, Bp - B), (0, 0)))

    row = lambda i: (i, 0)
    const = lambda i: (0, 0)

    out = pl.pallas_call(
        _triple_layer_kernel,
        out_shape=jax.ShapeDtypeStruct((Bp, Op), jnp.float32),
        grid=(Bp // TB,),
        in_specs=[
            pl.BlockSpec((TB, D), row),            # x tile, double-buffered DMA
            pl.BlockSpec((TB, 1), row),            # t tile
            pl.BlockSpec(pp["w1"].shape, const),   # weights: DMA'd once, resident
            pl.BlockSpec(pp["w2"].shape, const),
            pl.BlockSpec(pp["w3"].shape, const),
            pl.BlockSpec(pp["tw1"].shape, const),
            pl.BlockSpec(pp["tw2"].shape, const),
            pl.BlockSpec(pp["b1"].shape, const),
            pl.BlockSpec(pp["bias"].shape, const),
        ],
        out_specs=pl.BlockSpec((TB, Op), row),
        compiler_params=pltpu.CompilerParams(
            dimension_semantics=("parallel",),     # megacore-shard batch blocks (v7x)
            vmem_limit_bytes=32 << 20),
    )(x, t, pp["w1"], pp["w2"], pp["w3"], pp["tw1"], pp["tw2"],
      pp["b1"], pp["bias"])
    return out[:B, :O]


# ---------------------------------------------------------------------------
# VAE forward (encoder -> reparameterization -> decoder).
# ---------------------------------------------------------------------------
def init_vae_params(key, input_dim, hidden_dim, latent_dim):
    ke, kd = jax.random.split(key)
    return dict(
        encoder=init_triple_layer_params(ke, input_dim, hidden_dim, 2 * latent_dim),
        decoder=init_triple_layer_params(kd, latent_dim, hidden_dim, input_dim),
    )


def vae_forward(x, t, eps, enc_packed, dec_packed, latent_dim, block_b=512):
    """VAE.forward((x, t)) with externally supplied reparameterization noise."""
    enc = triple_layer_forward(x, t, enc_packed, block_b)
    mean, logvar = enc[:, :latent_dim], enc[:, latent_dim:]
    # PyTorch reparameterization is z = mean + var * epsilon with var == logvar;
    # trivial elementwise op kept in plain JAX (noise generated host-side).
    z = mean + logvar * eps
    x_hat = triple_layer_forward(z, t, dec_packed, block_b)
    return x_hat, mean, logvar


# ---------------------------------------------------------------------------
# Pure-JAX references (same MXU-operand dtype as the kernel).
# ---------------------------------------------------------------------------
def reference_triple_layer(x, t, p, compute_dtype=jnp.float32):
    cdt = compute_dtype
    lrelu = lambda v: jnp.where(v > 0, v, 0.2 * v)
    dot = lambda a, w: jnp.dot(a.astype(cdt), w.astype(cdt),
                               preferred_element_type=jnp.float32)
    t_embed = dot(lrelu(t * p["tw1"] + p["tb1"]), p["tw2"]) + p["tb2"]
    h = lrelu(dot(x, p["w1"]) + p["b1"] + t_embed)
    h = lrelu(dot(h, p["w2"]) + p["b2"])
    return dot(h, p["w3"]) + p["b3"]


def reference_vae_forward(x, t, eps, params, latent_dim, compute_dtype=jnp.float32):
    enc = reference_triple_layer(x, t, params["encoder"], compute_dtype)
    mean, logvar = enc[:, :latent_dim], enc[:, latent_dim:]
    z = mean + logvar * eps
    x_hat = reference_triple_layer(z, t, params["decoder"], compute_dtype)
    return x_hat, mean, logvar


if __name__ == "__main__":
    B, D, H, LATENT = 16, 32, 32, 8
    key = jax.random.PRNGKey(0)
    kx, kt, ke, kp = jax.random.split(key, 4)

    x = jax.random.normal(kx, (B, D), jnp.float32)
    t = jax.random.uniform(kt, (B, 1), jnp.float32)
    eps = jax.random.normal(ke, (B, LATENT), jnp.float32)
    params = init_vae_params(kp, D, H, LATENT)

    # --- single Triple_Layer_with_Embedding kernel at both precisions --------
    for cdt, tol in ((jnp.float32, 1e-4), (jnp.bfloat16, 2e-2)):
        pp = prepare_triple_layer_params(params["encoder"], cdt)
        out = jax.block_until_ready(triple_layer_forward(x, t, pp))
        ref = reference_triple_layer(x, t, params["encoder"], cdt)
        assert out.shape == (B, 2 * LATENT)
        assert jnp.allclose(out, ref, atol=tol, rtol=tol), f"mismatch ({cdt})"

    # --- full VAE forward (bf16 MXU operands, f32 accumulation/elementwise) --
    cdt = jnp.bfloat16
    pe = prepare_triple_layer_params(params["encoder"], cdt)
    pd = prepare_triple_layer_params(params["decoder"], cdt)
    x_hat, mean, logvar = vae_forward(x, t, eps, pe, pd, LATENT)
    x_hat = jax.block_until_ready(x_hat)

    rx, rm, rl = reference_vae_forward(x, t, eps, params, LATENT, cdt)
    assert x_hat.shape == (B, D)
    assert mean.shape == (B, LATENT) and logvar.shape == (B, LATENT)
    assert jnp.allclose(mean, rm, atol=2e-2, rtol=2e-2), "mean mismatch"
    assert jnp.allclose(logvar, rl, atol=2e-2, rtol=2e-2), "logvar mismatch"
    assert jnp.allclose(x_hat, rx, atol=2e-2, rtol=2e-2), "x_hat mismatch"

    print("KERNEL_OK")
</pallas_src>

<mosaic_0001>
module attributes {stable_mosaic.version = 11 : i64} {
  func.func @_triple_layer_kernel(%arg0: i32, %arg1: memref<16x32xf32, #tpu.memory_space<vmem>>, %arg2: memref<16x1xf32, #tpu.memory_space<vmem>>, %arg3: memref<32x128xf32, #tpu.memory_space<vmem>>, %arg4: memref<128x128xf32, #tpu.memory_space<vmem>>, %arg5: memref<128x128xf32, #tpu.memory_space<vmem>>, %arg6: memref<1x128xf32, #tpu.memory_space<vmem>>, %arg7: memref<128x128xf32, #tpu.memory_space<vmem>>, %arg8: memref<1x128xf32, #tpu.memory_space<vmem>>, %arg9: memref<3x128xf32, #tpu.memory_space<vmem>>, %arg10: memref<16x128xf32, #tpu.memory_space<vmem>>) attributes {dimension_semantics = [#tpu.dimension_semantics<parallel>], iteration_bounds = array<i64: 1>, scalar_prefetch = 0 : i64, scratch_operands = 0 : i64, tpu.core_type = #tpu.core_type<tc>, window_params = [{transform_indices = @transform_0, window_bounds = array<i64: 16, 32>}, {transform_indices = @transform_1, window_bounds = array<i64: 16, 1>}, {pipeline_mode = #tpu.pipeline_mode<synchronous>, transform_indices = @transform_2, window_bounds = array<i64: 32, 128>}, {pipeline_mode = #tpu.pipeline_mode<synchronous>, transform_indices = @transform_3, window_bounds = array<i64: 128, 128>}, {pipeline_mode = #tpu.pipeline_mode<synchronous>, transform_indices = @transform_4, window_bounds = array<i64: 128, 128>}, {pipeline_mode = #tpu.pipeline_mode<synchronous>, transform_indices = @transform_5, window_bounds = array<i64: 1, 128>}, {pipeline_mode = #tpu.pipeline_mode<synchronous>, transform_indices = @transform_6, window_bounds = array<i64: 128, 128>}, {pipeline_mode = #tpu.pipeline_mode<synchronous>, transform_indices = @transform_7, window_bounds = array<i64: 1, 128>}, {pipeline_mode = #tpu.pipeline_mode<synchronous>, transform_indices = @transform_8, window_bounds = array<i64: 3, 128>}, {transform_indices = @transform_9, window_bounds = array<i64: 16, 128>}]} {
    %c0 = arith.constant 0 : index
    %c0_0 = arith.constant 0 : index
    %0 = vector.load %arg2[%c0, %c0_0] : memref<16x1xf32, #tpu.memory_space<vmem>>, vector<16x1xf32>
    %c0_1 = arith.constant 0 : index
    %c0_2 = arith.constant 0 : index
    %1 = vector.load %arg9[%c0_1, %c0_2] : memref<3x128xf32, #tpu.memory_space<vmem>>, vector<1x128xf32>
    %c1 = arith.constant 1 : index
    %c0_3 = arith.constant 0 : index
    %2 = vector.load %arg9[%c1, %c0_3] : memref<3x128xf32, #tpu.memory_space<vmem>>, vector<1x128xf32>
    %c2 = arith.constant 2 : index
    %c0_4 = arith.constant 0 : index
    %3 = vector.load %arg9[%c2, %c0_4] : memref<3x128xf32, #tpu.memory_space<vmem>>, vector<1x128xf32>
    %c0_5 = arith.constant 0 : index
    %c0_6 = arith.constant 0 : index
    %4 = vector.load %arg6[%c0_5, %c0_6] : memref<1x128xf32, #tpu.memory_space<vmem>>, vector<1x128xf32>
    %5 = vector.broadcast %0 : vector<16x1xf32> to vector<16x128xf32>
    %6 = vector.broadcast %4 : vector<1x128xf32> to vector<16x128xf32>
    %7 = arith.mulf %5, %6 : vector<16x128xf32>
    %8 = vector.broadcast %1 : vector<1x128xf32> to vector<16x128xf32>
    %9 = arith.addf %7, %8 : vector<16x128xf32>
    %cst = arith.constant 0.000000e+00 : f32
    %10 = vector.broadcast %cst : f32 to vector<16x128xf32>
    %11 = arith.cmpf ogt, %9, %10 : vector<16x128xf32>
    %cst_7 = arith.constant 2.000000e-01 : f32
    %12 = vector.broadcast %cst_7 : f32 to vector<16x128xf32>
    %13 = arith.mulf %12, %9 : vector<16x128xf32>
    %14 = arith.select %11, %9, %13 : vector<16x128xi1>, vector<16x128xf32>
    %c0_8 = arith.constant 0 : index
    %c0_9 = arith.constant 0 : index
    %15 = vector.load %arg7[%c0_8, %c0_9] : memref<128x128xf32, #tpu.memory_space<vmem>>, vector<128x128xf32>
    %cst_10 = arith.constant dense<0.000000e+00> : vector<16x128xf32>
    %16 = tpu.matmul %14, %15, %cst_10 {dimension_numbers = #tpu.dot_dimension_numbers<[1], [0], [0], [1], [0, 0, 1, 1], [], []>} : vector<16x128xf32>, vector<128x128xf32>, vector<16x128xf32> -> vector<16x128xf32>
    %c0_11 = arith.constant 0 : index
    %c0_12 = arith.constant 0 : index
    %17 = vector.load %arg1[%c0_11, %c0_12] : memref<16x32xf32, #tpu.memory_space<vmem>>, vector<16x32xf32>
    %c0_13 = arith.constant 0 : index
    %c0_14 = arith.constant 0 : index
    %18 = vector.load %arg3[%c0_13, %c0_14] : memref<32x128xf32, #tpu.memory_space<vmem>>, vector<32x128xf32>
    %cst_15 = arith.constant dense<0.000000e+00> : vector<16x128xf32>
    %19 = tpu.matmul %17, %18, %cst_15 {dimension_numbers = #tpu.dot_dimension_numbers<[1], [0], [0], [1], [0, 0, 1, 1], [], []>} : vector<16x32xf32>, vector<32x128xf32>, vector<16x128xf32> -> vector<16x128xf32>
    %c0_16 = arith.constant 0 : index
    %c0_17 = arith.constant 0 : index
    %20 = vector.load %arg8[%c0_16, %c0_17] : memref<1x128xf32, #tpu.memory_space<vmem>>, vector<1x128xf32>
    %21 = vector.broadcast %20 : vector<1x128xf32> to vector<16x128xf32>
    %22 = arith.addf %19, %21 : vector<16x128xf32>
    %23 = arith.addf %22, %16 : vector<16x128xf32>
    %cst_18 = arith.constant 0.000000e+00 : f32
    %24 = vector.broadcast %cst_18 : f32 to vector<16x128xf32>
    %25 = arith.cmpf ogt, %23, %24 : vector<16x128xf32>
    %cst_19 = arith.constant 2.000000e-01 : f32
    %26 = vector.broadcast %cst_19 : f32 to vector<16x128xf32>
    %27 = arith.mulf %26, %23 : vector<16x128xf32>
    %28 = arith.select %25, %23, %27 : vector<16x128xi1>, vector<16x128xf32>
    %c0_20 = arith.constant 0 : index
    %c0_21 = arith.constant 0 : index
    %29 = vector.load %arg4[%c0_20, %c0_21] : memref<128x128xf32, #tpu.memory_space<vmem>>, vector<128x128xf32>
    %cst_22 = arith.constant dense<0.000000e+00> : vector<16x128xf32>
    %30 = tpu.matmul %28, %29, %cst_22 {dimension_numbers = #tpu.dot_dimension_numbers<[1], [0], [0], [1], [0, 0, 1, 1], [], []>} : vector<16x128xf32>, vector<128x128xf32>, vector<16x128xf32> -> vector<16x128xf32>
    %31 = vector.broadcast %2 : vector<1x128xf32> to vector<16x128xf32>
    %32 = arith.addf %30, %31 : vector<16x128xf32>
    %cst_23 = arith.constant 0.000000e+00 : f32
    %33 = vector.broadcast %cst_23 : f32 to vector<16x128xf32>
    %34 = arith.cmpf ogt, %32, %33 : vector<16x128xf32>
    %cst_24 = arith.constant 2.000000e-01 : f32
    %35 = vector.broadcast %cst_24 : f32 to vector<16x128xf32>
    %36 = arith.mulf %35, %32 : vector<16x128xf32>
    %37 = arith.select %34, %32, %36 : vector<16x128xi1>, vector<16x128xf32>
    %c0_25 = arith.constant 0 : index
    %c0_26 = arith.constant 0 : index
    %38 = vector.load %arg5[%c0_25, %c0_26] : memref<128x128xf32, #tpu.memory_space<vmem>>, vector<128x128xf32>
    %cst_27 = arith.constant dense<0.000000e+00> : vector<16x128xf32>
    %39 = tpu.matmul %37, %38, %cst_27 {dimension_numbers = #tpu.dot_dimension_numbers<[1], [0], [0], [1], [0, 0, 1, 1], [], []>} : vector<16x128xf32>, vector<128x128xf32>, vector<16x128xf32> -> vector<16x128xf32>
    %40 = vector.broadcast %3 : vector<1x128xf32> to vector<16x128xf32>
    %41 = arith.addf %39, %40 : vector<16x128xf32>
    %c0_28 = arith.constant 0 : index
    %c0_29 = arith.constant 0 : index
    %42 = vector.load %arg10[%c0_28, %c0_29] : memref<16x128xf32, #tpu.memory_space<vmem>>, vector<16x128xf32>
    tpu.vector_store %arg10[%c0_28, %c0_29], %41 {strides = array<i32>} : memref<16x128xf32, #tpu.memory_space<vmem>>, vector<16x128xf32>,
    return
  }
  func.func @transform_0(%arg0: i32) -> (i32, i32) {
    %c0_i32 = arith.constant 0 : i32
    %c0_i32_0 = arith.constant 0 : i32
    return %arg0, %c0_i32 : i32, i32
  }
  func.func @transform_1(%arg0: i32) -> (i32, i32) {
    %c0_i32 = arith.constant 0 : i32
    %c0_i32_0 = arith.constant 0 : i32
    return %arg0, %c0_i32 : i32, i32
  }
  func.func @transform_2(%arg0: i32) -> (i32, i32) {
    %c0_i32 = arith.constant 0 : i32
    %c0_i32_0 = arith.constant 0 : i32
    %c0_i32_1 = arith.constant 0 : i32
    return %c0_i32, %c0_i32_0 : i32, i32
  }
  func.func @transform_3(%arg0: i32) -> (i32, i32) {
    %c0_i32 = arith.constant 0 : i32
    %c0_i32_0 = arith.constant 0 : i32
    %c0_i32_1 = arith.constant 0 : i32
    return %c0_i32, %c0_i32_0 : i32, i32
  }
  func.func @transform_4(%arg0: i32) -> (i32, i32) {
    %c0_i32 = arith.constant 0 : i32
    %c0_i32_0 = arith.constant 0 : i32
    %c0_i32_1 = arith.constant 0 : i32
    return %c0_i32, %c0_i32_0 : i32, i32
  }
  func.func @transform_5(%arg0: i32) -> (i32, i32) {
    %c0_i32 = arith.constant 0 : i32
    %c0_i32_0 = arith.constant 0 : i32
    %c0_i32_1 = arith.constant 0 : i32
    return %c0_i32, %c0_i32_0 : i32, i32
  }
  func.func @transform_6(%arg0: i32) -> (i32, i32) {
    %c0_i32 = arith.constant 0 : i32
    %c0_i32_0 = arith.constant 0 : i32
    %c0_i32_1 = arith.constant 0 : i32
    return %c0_i32, %c0_i32_0 : i32, i32
  }
  func.func @transform_7(%arg0: i32) -> (i32, i32) {
    %c0_i32 = arith.constant 0 : i32
    %c0_i32_0 = arith.constant 0 : i32
    %c0_i32_1 = arith.constant 0 : i32
    return %c0_i32, %c0_i32_0 : i32, i32
  }
  func.func @transform_8(%arg0: i32) -> (i32, i32) {
    %c0_i32 = arith.constant 0 : i32
    %c0_i32_0 = arith.constant 0 : i32
    %c0_i32_1 = arith.constant 0 : i32
    return %c0_i32, %c0_i32_0 : i32, i32
  }
  func.func @transform_9(%arg0: i32) -> (i32, i32) {
    %c0_i32 = arith.constant 0 : i32
    %c0_i32_0 = arith.constant 0 : i32
    return %arg0, %c0_i32 : i32, i32
  }
}

</mosaic_0001>

<llo_original>
// kernel: tpu_custom_call.1
$region0: #{tpu_custom_call.1}
  #allocation0 [shape = 'u32[]', space=smem, size = 0x4, offset = 0x4, fixed_abs, tag = 'smem constant byte address 0x4 - core index']
  #allocation1 [shape = 'u32[144,128]{1,0:T(1,128)}', space=vmem, size = 0x12000, scoped, tag = 'internal scratch']
  %s0 = inlined_call_operand.vmem [shape: f32[16,32], index: 0, kind: input, shape index: {}]
  %s1 = inlined_call_operand.vmem [shape: f32[16,1], index: 1, kind: input, shape index: {}]
  %s2 = inlined_call_operand.hbm [shape: f32[32,128], index: 2, kind: input, shape index: {}]
  %s3 = inlined_call_operand.hbm [shape: f32[128,128], index: 3, kind: input, shape index: {}]
  %s4 = inlined_call_operand.hbm [shape: f32[128,128], index: 4, kind: input, shape index: {}]
  %s5 = inlined_call_operand.vmem [shape: f32[1,128], index: 5, kind: input, shape index: {}]
  %s6 = inlined_call_operand.hbm [shape: f32[128,128], index: 6, kind: input, shape index: {}]
  %s7 = inlined_call_operand.vmem [shape: f32[1,128], index: 7, kind: input, shape index: {}]
  %s8 = inlined_call_operand.vmem [shape: f32[3,128], index: 8, kind: input, shape index: {}]
  %s9 = inlined_call_operand.hbm [shape: f32[16,128], index: 9, kind: output, shape index: {}]
  %s10 = sld [smem:[#allocation0]]
  $region62: #{tpu_custom_call.1} parent=0
    _
  %s12 = ssub.s32 1, %s10
  %s13 = scalar_select 0, %s12, %s10
  $region1: #{tpu_custom_call.1} parent=0
    #allocation2 [shape = 'u8[16384]{0}', space=vmem, size = 0x4000, scoped, tag = 'input window, operand 2, single buffered']
    #allocation3 [shape = 's32[1]{0}', space=sflag, size = 0x4, scoped, tag = 'scoped memory for tpu_custom_call.1']
    #allocation4 [shape = 's32[1]{0}', space=sflag, size = 0x4, scoped, tag = 'scoped memory for tpu_custom_call.1']
    #allocation5 [shape = 'u8[65536]{0}', space=vmem, size = 0x10000, scoped, tag = 'input window, operand 3, single buffered']
    #allocation6 [shape = 's32[1]{0}', space=sflag, size = 0x4, scoped, tag = 'scoped memory for tpu_custom_call.1']
    #allocation7 [shape = 'u8[65536]{0}', space=vmem, size = 0x10000, scoped, tag = 'input window, operand 4, single buffered']
    #allocation8 [shape = 'u8[65536]{0}', space=vmem, size = 0x10000, scoped, tag = 'input window, operand 6, single buffered']
    #allocation9 [shape = 's32[1]{0}', space=sflag, size = 0x4, scoped, tag = 'scoped memory for tpu_custom_call.1']
    #allocation10 [shape = 'u8[8192]{0}', space=vmem, size = 0x2000, scoped, tag = 'output window, operand 0, single buffered']
    %14 = vsyncpa [#allocation3], 0
    %15 = vsyncpa [#allocation6], 0
    %16 = vsyncpa [#allocation9], 0
    %17 = vsyncpa [#allocation4], 0
    // Predicated region
    $region2: #{tpu_custom_call.1} parent=1 // pred_check
      _
    $region3: #{tpu_custom_call.1} parent=1 // pred_check_branch
      %19 = sbr.rel (0) target = $region5
    $region4: #{tpu_custom_call.1} parent=1 // pred_region
      _
    $region5: #{tpu_custom_call.1} parent=1 // pred_fallthru
      _
    // Predicated region
    $region6: #{tpu_custom_call.1} parent=1 // pred_check
      _
    $region7: #{tpu_custom_call.1} parent=1 // pred_check_branch
      %21 = sbr.rel (0) target = $region9
    $region8: #{tpu_custom_call.1} parent=1 // pred_region
      _
    $region9: #{tpu_custom_call.1} parent=1 // pred_fallthru
      _
    // Predicated region
    $region10: #{tpu_custom_call.1} parent=1 // pred_check
      _
    $region11: #{tpu_custom_call.1} parent=1 // pred_check_branch
      %23 = sbr.rel (0) target = $region13
    $region12: #{tpu_custom_call.1} parent=1 // pred_region
      %s25 = ssub.s32 512, 512
      %26 = vsyncadd [#allocation3], %s25
      %s27 = sshll.u32 [#allocation2], 4
      %s28 = int_to_ptr.vmem [resolvable:$true] %s27
      %33 = dma.hbm_to_vmem [thread:$0]  %s2, 512, %s28, [#allocation3], 128, 128, 8
    $region13: #{tpu_custom_call.1} parent=1 // pred_fallthru
      _
    // Predicated region
    $region14: #{tpu_custom_call.1} parent=1 // pred_check
      _
    $region15: #{tpu_custom_call.1} parent=1 // pred_check_branch
      %35 = sbr.rel (0) target = $region17
    $region16: #{tpu_custom_call.1} parent=1 // pred_region
      %s37 = ssub.s32 2048, 2048
      %38 = vsyncadd [#allocation6], %s37
      %s39 = sshll.u32 [#allocation5], 4
      %s40 = int_to_ptr.vmem [resolvable:$true] %s39
      %45 = dma.hbm_to_vmem [thread:$0]  %s3, 2048, %s40, [#allocation6], 128, 128, 8
    $region17: #{tpu_custom_call.1} parent=1 // pred_fallthru
      _
    // Predicated region
    $region18: #{tpu_custom_call.1} parent=1 // pred_check
      _
    $region19: #{tpu_custom_call.1} parent=1 // pred_check_branch
      %47 = sbr.rel (0) target = $region21
    $region20: #{tpu_custom_call.1} parent=1 // pred_region
      %s49 = ssub.s32 2048, 2048
      %50 = vsyncadd [#allocation6], %s49
      %s51 = sshll.u32 [#allocation7], 4
      %s52 = int_to_ptr.vmem [resolvable:$true] %s51
      %57 = dma.hbm_to_vmem [thread:$0]  %s4, 2048, %s52, [#allocation6], 128, 128, 8
    $region21: #{tpu_custom_call.1} parent=1 // pred_fallthru
      _
    // Predicated region
    $region22: #{tpu_custom_call.1} parent=1 // pred_check
      _
    $region23: #{tpu_custom_call.1} parent=1 // pred_check_branch
      %59 = sbr.rel (0) target = $region25
    $region24: #{tpu_custom_call.1} parent=1 // pred_region
      _
    $region25: #{tpu_custom_call.1} parent=1 // pred_fallthru
      _
    // Predicated region
    $region26: #{tpu_custom_call.1} parent=1 // pred_check
      _
    $region27: #{tpu_custom_call.1} parent=1 // pred_check_branch
      %61 = sbr.rel (0) target = $region29
    $region28: #{tpu_custom_call.1} parent=1 // pred_region
      %s63 = ssub.s32 2048, 2048
      %64 = vsyncadd [#allocation9], %s63
      %s65 = sshll.u32 [#allocation8], 4
      %s66 = int_to_ptr.vmem [resolvable:$true] %s65
      %71 = dma.hbm_to_vmem [thread:$0]  %s6, 2048, %s66, [#allocation9], 128, 128, 8
    $region29: #{tpu_custom_call.1} parent=1 // pred_fallthru
      _
    // Predicated region
    $region30: #{tpu_custom_call.1} parent=1 // pred_check
      _
    $region31: #{tpu_custom_call.1} parent=1 // pred_check_branch
      %73 = sbr.rel (0) target = $region33
    $region32: #{tpu_custom_call.1} parent=1 // pred_region
      _
    $region33: #{tpu_custom_call.1} parent=1 // pred_fallthru
      _
    // Predicated region
    $region34: #{tpu_custom_call.1} parent=1 // pred_check
      _
    $region35: #{tpu_custom_call.1} parent=1 // pred_check_branch
      %75 = sbr.rel (0) target = $region37
    $region36: #{tpu_custom_call.1} parent=1 // pred_region
      _
    $region37: #{tpu_custom_call.1} parent=1 // pred_fallthru
      _
    // Predicated region
    $region38: #{tpu_custom_call.1} parent=1 // pred_check
      _
    $region39: #{tpu_custom_call.1} parent=1 // pred_check_branch
      %77 = sbr.rel (0) target = $region41
    $region40: #{tpu_custom_call.1} parent=1 // pred_region
      %78 = dma.done [#allocation3], 512
    $region41: #{tpu_custom_call.1} parent=1 // pred_fallthru
      _
    // Predicated region
    $region42: #{tpu_custom_call.1} parent=1 // pred_check
      _
    $region43: #{tpu_custom_call.1} parent=1 // pred_check_branch
      %80 = sbr.rel (0) target = $region45
    $region44: #{tpu_custom_call.1} parent=1 // pred_region
      %81 = dma.done [#allocation6], 2048
    $region45: #{tpu_custom_call.1} parent=1 // pred_fallthru
      _
    // Predicated region
    $region46: #{tpu_custom_call.1} parent=1 // pred_check
      _
    $region47: #{tpu_custom_call.1} parent=1 // pred_check_branch
      %83 = sbr.rel (0) target = $region49
    $region48: #{tpu_custom_call.1} parent=1 // pred_region
      %84 = dma.done [#allocation6], 2048
    $region49: #{tpu_custom_call.1} parent=1 // pred_fallthru
      _
    // Predicated region
    $region50: #{tpu_custom_call.1} parent=1 // pred_check
      _
    $region51: #{tpu_custom_call.1} parent=1 // pred_check_branch
      %86 = sbr.rel (0) target = $region53
    $region52: #{tpu_custom_call.1} parent=1 // pred_region
      %87 = dma.done [#allocation9], 2048
    $region53: #{tpu_custom_call.1} parent=1 // pred_fallthru
      _
    %v88 = vld [vmem:[%s1] sm:$0xff]
    %v89 = vld [vmem:[%s1 + $0x8] sm:$0xff]
    %v90 = vld [vmem:[%s8] sm:$0x1]
    %v91 = vld [vmem:[%s8 + $0x1] sm:$0x1]
    %v92 = vld [vmem:[%s8 + $0x2] sm:$0x1]
    %v93 = vld [vmem:[%s5] sm:$0x1]
    %95 = vset.pattern.permute.xlu0 0
    %96 = vperm.xlu0 %95, %v88
    %v97 = vpop.permute.xlu0 %96
    %100 = vset.pattern.permute.xlu0 0
    %101 = vperm.xlu0 %100, %v89
    %v102 = vpop.permute.xlu0 %101
    %v105 = vlaneseq
    %v106 = vshrl.u32 %v105, 7
    %v107 = vsub.s32 0, %v106
    %v108 = vrot.slane %v93, %v107
    %v110 = vmul.f32 %v97, %v108
    %v111 = vmul.f32 %v102, %v108
    %v112 = vlaneseq
    %v113 = vshrl.u32 %v112, 7
    %v114 = vsub.s32 0, %v113
    %v115 = vrot.slane %v90, %v114
    %v116 = vadd.f32 %v110, %v115
    %v117 = vadd.f32 %v111, %v115
    %vm118 = vcmp.gt.f32.partialorder %v116, 0.0
    %vm119 = vcmp.gt.f32.partialorder %v117, 0.0
    %v120 = vmul.f32 %v116, 0.2
    %v121 = vmul.f32 %v117, 0.2
    %v122 = vsel %vm118, %v116, %v120
    %v123 = vsel %vm119, %v117, %v121
    %v124 = vld [vmem:[#allocation8] sm:$0xff]
    %v125 = vld [vmem:[#allocation8 + $0x8] sm:$0xff]
    %v126 = vld [vmem:[#allocation8 + $0x10] sm:$0xff]
    %v127 = vld [vmem:[#allocation8 + $0x18] sm:$0xff]
    %v128 = vld [vmem:[#allocation8 + $0x20] sm:$0xff]
    %v129 = vld [vmem:[#allocation8 + $0x28] sm:$0xff]
    %v130 = vld [vmem:[#allocation8 + $0x30] sm:$0xff]
    %v131 = vld [vmem:[#allocation8 + $0x38] sm:$0xff]
    %v132 = vld [vmem:[#allocation8 + $0x40] sm:$0xff]
    %v133 = vld [vmem:[#allocation8 + $0x48] sm:$0xff]
    %v134 = vld [vmem:[#allocation8 + $0x50] sm:$0xff]
    %v135 = vld [vmem:[#allocation8 + $0x58] sm:$0xff]
    %v136 = vld [vmem:[#allocation8 + $0x60] sm:$0xff]
    %v137 = vld [vmem:[#allocation8 + $0x68] sm:$0xff]
    %v138 = vld [vmem:[#allocation8 + $0x70] sm:$0xff]
    %v139 = vld [vmem:[#allocation8 + $0x78] sm:$0xff]
    %140 = vmatprep.subr.mxu0 0.0
    %141 = vmatpush1.msra.mxu0 %v139
    %142 = vmatprep.subr.mxu0 0.0
    %143 = vmatpush1.msra.mxu0 %v138
    %144 = vmatprep.subr.mxu0 0.0
    %145 = vmatpush1.msra.mxu0 %v137
    %146 = vmatprep.subr.mxu0 0.0
    %147 = vmatpush1.msra.mxu0 %v136
    %148 = vmatprep.subr.mxu0 0.0
    %149 = vmatpush1.msra.mxu0 %v135
    %150 = vmatprep.subr.mxu0 0.0
    %151 = vmatpush1.msra.mxu0 %v134
    %152 = vmatprep.subr.mxu0 0.0
    %153 = vmatpush1.msra.mxu0 %v133
    %154 = vmatprep.subr.mxu0 0.0
    %155 = vmatpush1.msra.mxu0 %v132
    %156 = vmatprep.subr.mxu0 0.0
    %157 = vmatpush1.msra.mxu0 %v131
    %158 = vmatprep.subr.mxu0 0.0
    %159 = vmatpush1.msra.mxu0 %v130
    %160 = vmatprep.subr.mxu0 0.0
    %161 = vmatpush1.msra.mxu0 %v129
    %162 = vmatprep.subr.mxu0 0.0
    %163 = vmatpush1.msra.mxu0 %v128
    %164 = vmatprep.subr.mxu0 0.0
    %165 = vmatpush1.msra.mxu0 %v127
    %166 = vmatprep.subr.mxu0 0.0
    %167 = vmatpush1.msra.mxu0 %v126
    %168 = vmatprep.subr.mxu0 0.0
    %169 = vmatpush1.msra.mxu0 %v125
    %170 = vmatprep.subr.mxu0 0.0
    %171 = vmatpush1.msra.mxu0 %v124
    %172 = vmatprep.subr.mxu0 0.0
    %173 = vmatpush2.msra.mxu0 0.0
    %174 = vmatprep.subr.mxu0 0.0
    %175 = vmatpush2.msra.mxu0 0.0
    %176 = vmatprep.subr.mxu0 0.0
    %177 = vmatpush2.msra.mxu0 0.0
    %178 = vmatprep.subr.mxu0 0.0
    %179 = vmatpush2.msra.mxu0 0.0
    %180 = vmatprep.subr.mxu0 0.0
    %181 = vmatpush2.msra.mxu0 0.0
    %182 = vmatprep.subr.mxu0 0.0
    %183 = vmatpush2.msra.mxu0 0.0
    %184 = vmatprep.subr.mxu0 0.0
    %185 = vmatpush2.msra.mxu0 0.0
    %186 = vmatprep.subr.mxu0 0.0
    %187 = vmatpush2.msra.mxu0 0.0
    %188 = vmatprep.subr.mxu0 0.0
    %189 = vmatpush2.msra.mxu0 0.0
    %190 = vmatprep.subr.mxu0 0.0
    %191 = vmatpush2.msra.mxu0 0.0
    %192 = vmatprep.subr.mxu0 0.0
    %193 = vmatpush2.msra.mxu0 0.0
    %194 = vmatprep.subr.mxu0 0.0
    %195 = vmatpush2.msra.mxu0 0.0
    %196 = vmatprep.subr.mxu0 0.0
    %197 = vmatpush2.msra.mxu0 0.0
    %198 = vmatprep.subr.mxu0 0.0
    %199 = vmatpush2.msra.mxu0 0.0
    %200 = vmatprep.subr.mxu0 0.0
    %201 = vmatpush2.msra.mxu0 0.0
    %202 = vmatprep.subr.mxu0 0.0
    %203 = vmatpush2.msra.mxu0 0.0
    %204 = vmatprep.mubr.f32.mxu0 0.0
    %205 = vmatmul.mubr.f32.gmra.mxu0 %v122
    %v206 = vpop.f32.mrf.mxu0
    %v207 = vadd.f32 0.0, %v206
    %v208 = vpop.f32.mrf.mxu0
    %209 = vmatprep.mubr.f32.mxu0 0.0
    %210 = vmatmul.mubr.f32.gmra.mxu0 %v123
    %v211 = vpop.f32.mrf.mxu0
    %v212 = vadd.f32 0.0, %v211
    %v213 = vpop.f32.mrf.mxu0
    %214 = vdwg.mxu0
    %v215 = vld [vmem:[%s0] sm:$0xff]
    %v216 = vld [vmem:[%s0 + $0x8] sm:$0xff]
    %v217 = vld [vmem:[#allocation2] sm:$0xff]
    %v218 = vld [vmem:[#allocation2 + $0x8] sm:$0xff]
    %v219 = vld [vmem:[#allocation2 + $0x10] sm:$0xff]
    %v220 = vld [vmem:[#allocation2 + $0x18] sm:$0xff]
    %v221 = vld [vmem:[%s7] sm:$0x1]
    %v223 = vlaneseq
    %v224 = vshrl.u32 %v223, 7
    %v225 = vsub.s32 0, %v224
    %v226 = vrot.slane %v221, %v225
    %vm228 = vcmask 261120
    %v230 = vsel %vm228, %v215, 0
    %v233 = vsel %vm228, %v216, 0
    %235 = vmatprep.subr.mxu0 0.0
    %236 = vmatpush1.msra.mxu0 0.0
    %237 = vmatprep.subr.mxu0 0.0
    %238 = vmatpush1.msra.mxu0 0.0
    %239 = vmatprep.subr.mxu0 0.0
    %240 = vmatpush1.msra.mxu0 0.0
    %241 = vmatprep.subr.mxu0 0.0
    %242 = vmatpush1.msra.mxu0 0.0
    %243 = vmatprep.subr.mxu0 0.0
    %244 = vmatpush1.msra.mxu0 0.0
    %245 = vmatprep.subr.mxu0 0.0
    %246 = vmatpush1.msra.mxu0 0.0
    %247 = vmatprep.subr.mxu0 0.0
    %248 = vmatpush1.msra.mxu0 0.0
    %249 = vmatprep.subr.mxu0 0.0
    %250 = vmatpush1.msra.mxu0 0.0
    %251 = vmatprep.subr.mxu0 0.0
    %252 = vmatpush1.msra.mxu0 0.0
    %253 = vmatprep.subr.mxu0 0.0
    %254 = vmatpush1.msra.mxu0 0.0
    %255 = vmatprep.subr.mxu0 0.0
    %256 = vmatpush1.msra.mxu0 0.0
    %257 = vmatprep.subr.mxu0 0.0
    %258 = vmatpush1.msra.mxu0 0.0
    %259 = vmatprep.subr.mxu0 0.0
    %260 = vmatpush1.msra.mxu0 %v220
    %261 = vmatprep.subr.mxu0 0.0
    %262 = vmatpush1.msra.mxu0 %v219
    %263 = vmatprep.subr.mxu0 0.0
    %264 = vmatpush1.msra.mxu0 %v218
    %265 = vmatprep.subr.mxu0 0.0
    %266 = vmatpush1.msra.mxu0 %v217
    %267 = vmatprep.subr.mxu0 0.0
    %268 = vmatpush2.msra.mxu0 0.0
    %269 = vmatprep.subr.mxu0 0.0
    %270 = vmatpush2.msra.mxu0 0.0
    %271 = vmatprep.subr.mxu0 0.0
    %272 = vmatpush2.msra.mxu0 0.0
    %273 = vmatprep.subr.mxu0 0.0
    %274 = vmatpush2.msra.mxu0 0.0
    %275 = vmatprep.subr.mxu0 0.0
    %276 = vmatpush2.msra.mxu0 0.0
    %277 = vmatprep.subr.mxu0 0.0
    %278 = vmatpush2.msra.mxu0 0.0
    %279 = vmatprep.subr.mxu0 0.0
    %280 = vmatpush2.msra.mxu0 0.0
    %281 = vmatprep.subr.mxu0 0.0
    %282 = vmatpush2.msra.mxu0 0.0
    %283 = vmatprep.subr.mxu0 0.0
    %284 = vmatpush2.msra.mxu0 0.0
    %285 = vmatprep.subr.mxu0 0.0
    %286 = vmatpush2.msra.mxu0 0.0
    %287 = vmatprep.subr.mxu0 0.0
    %288 = vmatpush2.msra.mxu0 0.0
    %289 = vmatprep.subr.mxu0 0.0
    %290 = vmatpush2.msra.mxu0 0.0
    %291 = vmatprep.subr.mxu0 0.0
    %292 = vmatpush2.msra.mxu0 0.0
    %293 = vmatprep.subr.mxu0 0.0
    %294 = vmatpush2.msra.mxu0 0.0
    %295 = vmatprep.subr.mxu0 0.0
    %296 = vmatpush2.msra.mxu0 0.0
    %297 = vmatprep.subr.mxu0 0.0
    %298 = vmatpush2.msra.mxu0 0.0
    %299 = vmatprep.mubr.f32.mxu0 0.0
    %300 = vmatmul.mubr.f32.gmra.mxu0 %v230
    %v301 = vpop.f32.mrf.mxu0
    %v302 = vadd.f32 %v226, %v301
    %v303 = vpop.f32.mrf.mxu0
    %304 = vmatprep.mubr.f32.mxu0 0.0
    %305 = vmatmul.mubr.f32.gmra.mxu0 %v233
    %v306 = vpop.f32.mrf.mxu0
    %v307 = vadd.f32 %v226, %v306
    %v308 = vpop.f32.mrf.mxu0
    %309 = vdwg.mxu0
    %v310 = vadd.f32 %v302, %v207
    %v311 = vadd.f32 %v307, %v212
    %vm312 = vcmp.gt.f32.partialorder %v310, 0.0
    %vm313 = vcmp.gt.f32.partialorder %v311, 0.0
    %v314 = vmul.f32 %v310, 0.2
    %v315 = vmul.f32 %v311, 0.2
    %v316 = vsel %vm312, %v310, %v314
    %v317 = vsel %vm313, %v311, %v315
    %v318 = vld [vmem:[#allocation5] sm:$0xff]
    %v319 = vld [vmem:[#allocation5 + $0x8] sm:$0xff]
    %v320 = vld [vmem:[#allocation5 + $0x10] sm:$0xff]
    %v321 = vld [vmem:[#allocation5 + $0x18] sm:$0xff]
    %v322 = vld [vmem:[#allocation5 + $0x20] sm:$0xff]
    %v323 = vld [vmem:[#allocation5 + $0x28] sm:$0xff]
    %v324 = vld [vmem:[#allocation5 + $0x30] sm:$0xff]
    %v325 = vld [vmem:[#allocation5 + $0x38] sm:$0xff]
    %v326 = vld [vmem:[#allocation5 + $0x40] sm:$0xff]
    %v327 = vld [vmem:[#allocation5 + $0x48] sm:$0xff]
    %v328 = vld [vmem:[#allocation5 + $0x50] sm:$0xff]
    %v329 = vld [vmem:[#allocation5 + $0x58] sm:$0xff]
    %v330 = vld [vmem:[#allocation5 + $0x60] sm:$0xff]
    %v331 = vld [vmem:[#allocation5 + $0x68] sm:$0xff]
    %v332 = vld [vmem:[#allocation5 + $0x70] sm:$0xff]
    %v333 = vld [vmem:[#allocation5 + $0x78] sm:$0xff]
    %v334 = vlaneseq
    %v335 = vshrl.u32 %v334, 7
    %v336 = vsub.s32 0, %v335
    %v337 = vrot.slane %v91, %v336
    %338 = vmatprep.subr.mxu0 0.0
    %339 = vmatpush1.msra.mxu0 %v333
    %340 = vmatprep.subr.mxu0 0.0
    %341 = vmatpush1.msra.mxu0 %v332
    %342 = vmatprep.subr.mxu0 0.0
    %343 = vmatpush1.msra.mxu0 %v331
    %344 = vmatprep.subr.mxu0 0.0
    %345 = vmatpush1.msra.mxu0 %v330
    %346 = vmatprep.subr.mxu0 0.0
    %347 = vmatpush1.msra.mxu0 %v329
    %348 = vmatprep.subr.mxu0 0.0
    %349 = vmatpush1.msra.mxu0 %v328
    %350 = vmatprep.subr.mxu0 0.0
    %351 = vmatpush1.msra.mxu0 %v327
    %352 = vmatprep.subr.mxu0 0.0
    %353 = vmatpush1.msra.mxu0 %v326
    %354 = vmatprep.subr.mxu0 0.0
    %355 = vmatpush1.msra.mxu0 %v325
    %356 = vmatprep.subr.mxu0 0.0
    %357 = vmatpush1.msra.mxu0 %v324
    %358 = vmatprep.subr.mxu0 0.0
    %359 = vmatpush1.msra.mxu0 %v323
    %360 = vmatprep.subr.mxu0 0.0
    %361 = vmatpush1.msra.mxu0 %v322
    %362 = vmatprep.subr.mxu0 0.0
    %363 = vmatpush1.msra.mxu0 %v321
    %364 = vmatprep.subr.mxu0 0.0
    %365 = vmatpush1.msra.mxu0 %v320
    %366 = vmatprep.subr.mxu0 0.0
    %367 = vmatpush1.msra.mxu0 %v319
    %368 = vmatprep.subr.mxu0 0.0
    %369 = vmatpush1.msra.mxu0 %v318
    %370 = vmatprep.subr.mxu0 0.0
    %371 = vmatpush2.msra.mxu0 0.0
    %372 = vmatprep.subr.mxu0 0.0
    %373 = vmatpush2.msra.mxu0 0.0
    %374 = vmatprep.subr.mxu0 0.0
    %375 = vmatpush2.msra.mxu0 0.0
    %376 = vmatprep.subr.mxu0 0.0
    %377 = vmatpush2.msra.mxu0 0.0
    %378 = vmatprep.subr.mxu0 0.0
    %379 = vmatpush2.msra.mxu0 0.0
    %380 = vmatprep.subr.mxu0 0.0
    %381 = vmatpush2.msra.mxu0 0.0
    %382 = vmatprep.subr.mxu0 0.0
    %383 = vmatpush2.msra.mxu0 0.0
    %384 = vmatprep.subr.mxu0 0.0
    %385 = vmatpush2.msra.mxu0 0.0
    %386 = vmatprep.subr.mxu0 0.0
    %387 = vmatpush2.msra.mxu0 0.0
    %388 = vmatprep.subr.mxu0 0.0
    %389 = vmatpush2.msra.mxu0 0.0
    %390 = vmatprep.subr.mxu0 0.0
    %391 = vmatpush2.msra.mxu0 0.0
    %392 = vmatprep.subr.mxu0 0.0
    %393 = vmatpush2.msra.mxu0 0.0
    %394 = vmatprep.subr.mxu0 0.0
    %395 = vmatpush2.msra.mxu0 0.0
    %396 = vmatprep.subr.mxu0 0.0
    %397 = vmatpush2.msra.mxu0 0.0
    %398 = vmatprep.subr.mxu0 0.0
    %399 = vmatpush2.msra.mxu0 0.0
    %400 = vmatprep.subr.mxu0 0.0
    %401 = vmatpush2.msra.mxu0 0.0
    %402 = vmatprep.mubr.f32.mxu0 0.0
    %403 = vmatmul.mubr.f32.gmra.mxu0 %v316
    %v404 = vpop.f32.mrf.mxu0
    %v405 = vadd.f32 %v337, %v404
    %v406 = vpop.f32.mrf.mxu0
    %407 = vmatprep.mubr.f32.mxu0 0.0
    %408 = vmatmul.mubr.f32.gmra.mxu0 %v317
    %v409 = vpop.f32.mrf.mxu0
    %v410 = vadd.f32 %v337, %v409
    %v411 = vpop.f32.mrf.mxu0
    %412 = vdwg.mxu0
    %vm413 = vcmp.gt.f32.partialorder %v405, 0.0
    %vm414 = vcmp.gt.f32.partialorder %v410, 0.0
    %v415 = vmul.f32 %v405, 0.2
    %v416 = vmul.f32 %v410, 0.2
    %v417 = vsel %vm413, %v405, %v415
    %v418 = vsel %vm414, %v410, %v416
    %v419 = vld [vmem:[#allocation7] sm:$0xff]
    %v420 = vld [vmem:[#allocation7 + $0x8] sm:$0xff]
    %v421 = vld [vmem:[#allocation7 + $0x10] sm:$0xff]
    %v422 = vld [vmem:[#allocation7 + $0x18] sm:$0xff]
    %v423 = vld [vmem:[#allocation7 + $0x20] sm:$0xff]
    %v424 = vld [vmem:[#allocation7 + $0x28] sm:$0xff]
    %v425 = vld [vmem:[#allocation7 + $0x30] sm:$0xff]
    %v426 = vld [vmem:[#allocation7 + $0x38] sm:$0xff]
    %v427 = vld [vmem:[#allocation7 + $0x40] sm:$0xff]
    %v428 = vld [vmem:[#allocation7 + $0x48] sm:$0xff]
    %v429 = vld [vmem:[#allocation7 + $0x50] sm:$0xff]
    %v430 = vld [vmem:[#allocation7 + $0x58] sm:$0xff]
    %v431 = vld [vmem:[#allocation7 + $0x60] sm:$0xff]
    %v432 = vld [vmem:[#allocation7 + $0x68] sm:$0xff]
    %v433 = vld [vmem:[#allocation7 + $0x70] sm:$0xff]
    %v434 = vld [vmem:[#allocation7 + $0x78] sm:$0xff]
    %v435 = vlaneseq
    %v436 = vshrl.u32 %v435, 7
    %v437 = vsub.s32 0, %v436
    %v438 = vrot.slane %v92, %v437
    %439 = vmatprep.subr.mxu0 0.0
    %440 = vmatpush1.msra.mxu0 %v434
    %441 = vmatprep.subr.mxu0 0.0
    %442 = vmatpush1.msra.mxu0 %v433
    %443 = vmatprep.subr.mxu0 0.0
    %444 = vmatpush1.msra.mxu0 %v432
    %445 = vmatprep.subr.mxu0 0.0
    %446 = vmatpush1.msra.mxu0 %v431
    %447 = vmatprep.subr.mxu0 0.0
    %448 = vmatpush1.msra.mxu0 %v430
    %449 = vmatprep.subr.mxu0 0.0
    %450 = vmatpush1.msra.mxu0 %v429
    %451 = vmatprep.subr.mxu0 0.0
    %452 = vmatpush1.msra.mxu0 %v428
    %453 = vmatprep.subr.mxu0 0.0
    %454 = vmatpush1.msra.mxu0 %v427
    %455 = vmatprep.subr.mxu0 0.0
    %456 = vmatpush1.msra.mxu0 %v426
    %457 = vmatprep.subr.mxu0 0.0
    %458 = vmatpush1.msra.mxu0 %v425
    %459 = vmatprep.subr.mxu0 0.0
    %460 = vmatpush1.msra.mxu0 %v424
    %461 = vmatprep.subr.mxu0 0.0
    %462 = vmatpush1.msra.mxu0 %v423
    %463 = vmatprep.subr.mxu0 0.0
    %464 = vmatpush1.msra.mxu0 %v422
    %465 = vmatprep.subr.mxu0 0.0
    %466 = vmatpush1.msra.mxu0 %v421
    %467 = vmatprep.subr.mxu0 0.0
    %468 = vmatpush1.msra.mxu0 %v420
    %469 = vmatprep.subr.mxu0 0.0
    %470 = vmatpush1.msra.mxu0 %v419
    %471 = vmatprep.subr.mxu0 0.0
    %472 = vmatpush2.msra.mxu0 0.0
    %473 = vmatprep.subr.mxu0 0.0
    %474 = vmatpush2.msra.mxu0 0.0
    %475 = vmatprep.subr.mxu0 0.0
    %476 = vmatpush2.msra.mxu0 0.0
    %477 = vmatprep.subr.mxu0 0.0
    %478 = vmatpush2.msra.mxu0 0.0
    %479 = vmatprep.subr.mxu0 0.0
    %480 = vmatpush2.msra.mxu0 0.0
    %481 = vmatprep.subr.mxu0 0.0
    %482 = vmatpush2.msra.mxu0 0.0
    %483 = vmatprep.subr.mxu0 0.0
    %484 = vmatpush2.msra.mxu0 0.0
    %485 = vmatprep.subr.mxu0 0.0
    %486 = vmatpush2.msra.mxu0 0.0
    %487 = vmatprep.subr.mxu0 0.0
    %488 = vmatpush2.msra.mxu0 0.0
    %489 = vmatprep.subr.mxu0 0.0
    %490 = vmatpush2.msra.mxu0 0.0
    %491 = vmatprep.subr.mxu0 0.0
    %492 = vmatpush2.msra.mxu0 0.0
    %493 = vmatprep.subr.mxu0 0.0
    %494 = vmatpush2.msra.mxu0 0.0
    %495 = vmatprep.subr.mxu0 0.0
    %496 = vmatpush2.msra.mxu0 0.0
    %497 = vmatprep.subr.mxu0 0.0
    %498 = vmatpush2.msra.mxu0 0.0
    %499 = vmatprep.subr.mxu0 0.0
    %500 = vmatpush2.msra.mxu0 0.0
    %501 = vmatprep.subr.mxu0 0.0
    %502 = vmatpush2.msra.mxu0 0.0
    %503 = vmatprep.mubr.f32.mxu0 0.0
    %504 = vmatmul.mubr.f32.gmra.mxu0 %v417
    %v505 = vpop.f32.mrf.mxu0
    %v506 = vadd.f32 %v438, %v505
    %v507 = vpop.f32.mrf.mxu0
    %508 = vmatprep.mubr.f32.mxu0 0.0
    %509 = vmatmul.mubr.f32.gmra.mxu0 %v418
    %v510 = vpop.f32.mrf.mxu0
    %v511 = vadd.f32 %v438, %v510
    %v512 = vpop.f32.mrf.mxu0
    %513 = vdwg.mxu0
    %514 = vst [vmem:[#allocation10] sm:$0xff] %v506
    %515 = vst [vmem:[#allocation10 + $0x8] sm:$0xff] %v511
    // Predicated region
    $region54: #{tpu_custom_call.1} parent=1 // pred_check
      _
    $region55: #{tpu_custom_call.1} parent=1 // pred_check_branch
      %517 = sbr.rel (0) target = $region57
    $region56: #{tpu_custom_call.1} parent=1 // pred_region
      %s519 = ssub.s32 256, 256
      %520 = vsyncadd [#allocation4], %s519
      %s521 = sshll.u32 [#allocation10], 4
      %s522 = int_to_ptr.vmem [resolvable:$true] %s521
      %527 = dma.vmem_to_hbm [thread:$0]  %s522, 256, %s9, [#allocation4], 128, 128, 8
    $region57: #{tpu_custom_call.1} parent=1 // pred_fallthru
      _
    // Predicated region
    $region58: #{tpu_custom_call.1} parent=1 // pred_check
      _
    $region59: #{tpu_custom_call.1} parent=1 // pred_check_branch
      %529 = sbr.rel (0) target = $region61
    $region60: #{tpu_custom_call.1} parent=1 // pred_region
      %530 = dma.done [#allocation4], 256
    $region61: #{tpu_custom_call.1} parent=1 // pred_fallthru
      _
    %531 = vsyncpa [#allocation3], 1
    %532 = vsyncpa [#allocation6], 1
    %533 = vsyncpa [#allocation9], 1
    %534 = vsyncpa [#allocation4], 1

</llo_original>
